<compile_context>
chip_gen: v6e
topology: v6e:2x2x1
jax: 0.10.0
libtpu: 0.0.40
codegen_flags: <defaults>
</compile_context>

<pallas_src>
import jax
import jax.numpy as jnp
from jax.experimental import pallas as pl
from jax.experimental.pallas import tpu as pltpu


def _round_up(x, m):
    return ((x + m - 1) // m) * m


def _pick_tile(total, cap, unit=128):
    """Largest multiple of `unit` <= min(cap, total) that divides `total`.

    `total` must itself be a multiple of `unit`, so `unit` always divides.
    """
    t = max((min(cap, total) // unit) * unit, unit)
    while total % t != 0:
        t -= unit
    return t


# ----------------------------- kernels ------------------------------------ #


def _linear_bias_kernel(x_ref, w_ref, b_ref, o_ref):
    """Collapsed-K kernel.  Grid = (M, N): one MXU dot, bias add, store."""
    acc = jnp.dot(x_ref[...], w_ref[...], preferred_element_type=jnp.float32)
    o_ref[...] = (acc + b_ref[...].astype(jnp.float32)).astype(o_ref.dtype)


def _linear_bias_acc_kernel(x_ref, w_ref, b_ref, o_ref, acc_ref):
    """K-looped kernel.  Grid = (M, N, K); bias folded into accumulator init."""
    k = pl.program_id(2)

    @pl.when(k == 0)
    def _():
        acc_ref[...] = jnp.broadcast_to(
            b_ref[...].astype(jnp.float32), acc_ref.shape
        )

    acc_ref[...] += jnp.dot(
        x_ref[...], w_ref[...], preferred_element_type=jnp.float32
    )

    @pl.when(k == pl.num_programs(2) - 1)
    def _():
        o_ref[...] = acc_ref[...].astype(o_ref.dtype)


# ------------------------- parameter preparation --------------------------- #


def prepare_classifier_params(weight, bias, param_dtype=None):
    """Call once at parameter-init time.

    Args:
      weight:      [C, F] (PyTorch nn.Linear layout).
      bias:        [C].
      param_dtype: optional storage dtype for the weight (e.g. jnp.bfloat16 to
                   halve HBM traffic and use the native MXU path on v6e/v7x).
                   Bias is always kept in f32 (epilogue math stays f32).
    Returns:
      (w_fc, b2d, num_classes): w_fc is [Fp, Cp] pre-transposed, zero-padded to
      128-multiples only; b2d is [1, Cp] f32.
    """
    C, F = weight.shape
    Fp = _round_up(F, 128)
    Cp = _round_up(C, 128)
    w_dtype = param_dtype if param_dtype is not None else weight.dtype
    w_fc = jnp.zeros((Fp, Cp), w_dtype).at[:F, :C].set(weight.astype(w_dtype).T)
    b2d = jnp.zeros((1, Cp), jnp.float32).at[0, :C].set(bias.astype(jnp.float32))
    return w_fc, b2d, C


# ------------------------------ forward ------------------------------------ #

# Below this many MACs the fixed pallas_call overhead dominates -> plain XLA.
_PALLAS_MAC_THRESHOLD = 1 << 20
_TM_CAP = 256
_TN_CAP = 1024
_TK_CAP = 2048
# Tile footprint budget: keeps double-buffered tiles safely inside v7x's 64 MiB
# VMEM (with headroom) and is generous on v5e/v6e's 128 MiB.
_TILE_VMEM_BUDGET = 36 * 1024 * 1024
_VMEM_LIMIT_BYTES = 48 * 1024 * 1024


def classifier_forward(x, w_fc, b2d, num_classes, *, force_pallas=False,
                       tile_vmem_budget=_TILE_VMEM_BUDGET):
    """nn.Linear forward using prepared (padded, pre-transposed) params.

    Args:
      x:            [B, F] input features (F <= w_fc.shape[0]).
      w_fc:         [Fp, Cp] prepared weight (see prepare_classifier_params).
      b2d:          [1, Cp] prepared f32 bias.
      num_classes:  original C (output is sliced back to this).
      force_pallas: skip the small-size XLA fast path (for testing).
      tile_vmem_budget: per-tile VMEM footprint budget in bytes (for testing /
                        per-generation tuning).
    Returns:
      [B, num_classes] logits, dtype of x.
    """
    B, Fx = x.shape
    Fp, Cp = w_fc.shape
    out_dtype = x.dtype

    if not force_pallas and B * Fx * num_classes <= _PALLAS_MAC_THRESHOLD:
        # Tiny head: plain XLA is strictly faster than a Pallas dispatch.
        y = jnp.dot(x, w_fc[:Fx, :], preferred_element_type=jnp.float32) + b2d
        return y[:, :num_classes].astype(out_dtype)

    # bf16-weight path: feed the MXU bf16 activations too; accumulate in f32.
    compute_dtype = w_fc.dtype if w_fc.dtype == jnp.bfloat16 else x.dtype
    x_c = x.astype(compute_dtype)

    xb = jnp.dtype(compute_dtype).itemsize
    wb = jnp.dtype(w_fc.dtype).itemsize
    ob = jnp.dtype(out_dtype).itemsize
    sub = 8 if xb >= 4 else 16  # min sublane tile for the input dtype

    # --- M tiling: keep batch padding within one sublane tile of B. ---
    n_m = -(-B // _TM_CAP)
    tm = _round_up(-(-B // n_m), sub)
    Bp = tm * n_m

    # --- N tiling: 128-multiple divisor of Cp, capped. ---
    tn = _pick_tile(Cp, _TN_CAP)
    # Give the v7x second TensorCore work: ensure >= 2 parallel blocks.
    if n_m * (Cp // tn) < 2 and Cp >= 256:
        tn = _pick_tile(Cp, tn // 2)

    def _fits(tk_, tn_, multi_k_):
        f = 2 * (tm * tk_ * xb + tk_ * tn_ * wb + tn_ * 4) + 2 * tm * tn_ * ob
        if multi_k_:
            f += tm * tn_ * 4  # f32 accumulator scratch
        return f <= tile_vmem_budget

    # --- K tiling: collapse the reduction axis entirely when it fits VMEM. ---
    if _fits(Fp, tn, False):
        tk, multi_k = Fp, False
    else:
        multi_k = True
        tk = _pick_tile(Fp, _TK_CAP)
        while tk > 128 and not _fits(tk, tn, True):
            tk = _pick_tile(Fp, tk - 128)
        while tn > 128 and not _fits(tk, tn, True):
            tn = _pick_tile(Cp, tn - 128)

    # Zero-pad activations only if needed (padded K cols hit zero weight rows).
    if (B, Fx) != (Bp, Fp):
        x_p = jnp.zeros((Bp, Fp), compute_dtype).at[:B, :Fx].set(x_c)
    else:
        x_p = x_c

    cost = pl.CostEstimate(
        flops=2 * Bp * Fp * Cp,
        transcendentals=0,
        bytes_accessed=Bp * Fp * xb + Fp * Cp * wb + Cp * 4 + Bp * Cp * ob,
    )

    if multi_k:
        grid = (Bp // tm, Cp // tn, Fp // tk)  # reduction axis last
        out = pl.pallas_call(
            _linear_bias_acc_kernel,
            out_shape=jax.ShapeDtypeStruct((Bp, Cp), out_dtype),
            grid_spec=pltpu.PrefetchScalarGridSpec(
                num_scalar_prefetch=0,
                grid=grid,
                in_specs=[
                    pl.BlockSpec((tm, tk), lambda i, j, k: (i, k)),  # x
                    pl.BlockSpec((tk, tn), lambda i, j, k: (k, j)),  # w (pre-T)
                    pl.BlockSpec((1, tn), lambda i, j, k: (0, j)),   # bias
                ],
                out_specs=pl.BlockSpec((tm, tn), lambda i, j, k: (i, j)),
                scratch_shapes=[pltpu.VMEM((tm, tn), jnp.float32)],
            ),
            compiler_params=pltpu.CompilerParams(
                dimension_semantics=("parallel", "parallel", "arbitrary"),
                vmem_limit_bytes=_VMEM_LIMIT_BYTES,
            ),
            cost_estimate=cost,
        )(x_p, w_fc, b2d)
    else:
        grid = (Bp // tm, Cp // tn)  # purely parallel grid, no K loop
        out = pl.pallas_call(
            _linear_bias_kernel,
            out_shape=jax.ShapeDtypeStruct((Bp, Cp), out_dtype),
            grid_spec=pltpu.PrefetchScalarGridSpec(
                num_scalar_prefetch=0,
                grid=grid,
                in_specs=[
                    pl.BlockSpec((tm, Fp), lambda i, j: (i, 0)),   # x (full K)
                    pl.BlockSpec((Fp, tn), lambda i, j: (0, j)),   # w (full K)
                    pl.BlockSpec((1, tn), lambda i, j: (0, j)),    # bias
                ],
                out_specs=pl.BlockSpec((tm, tn), lambda i, j: (i, j)),
            ),
            compiler_params=pltpu.CompilerParams(
                dimension_semantics=("parallel", "parallel"),
                vmem_limit_bytes=_VMEM_LIMIT_BYTES,
            ),
            cost_estimate=cost,
        )(x_p, w_fc, b2d)

    return out[:B, :num_classes]


# ------------------------------- tests ------------------------------------- #

if __name__ == "__main__":
    key = jax.random.PRNGKey(0)
    kx, kw, kb, kx2, kw2, kb2 = jax.random.split(key, 6)

    # --- Small shapes consistent with the module: feature_dim=32, num_classes=16.
    B, F, C = 8, 32, 16
    x = jax.random.normal(kx, (B, F), dtype=jnp.float32)
    bound = 1.0 / (F ** 0.5)
    weight = jax.random.uniform(kw, (C, F), minval=-bound, maxval=bound,
                                dtype=jnp.float32)
    bias = jax.random.uniform(kb, (C,), minval=-bound, maxval=bound,
                              dtype=jnp.float32)

    w_fc, b2d, nc = prepare_classifier_params(weight, bias)
    y_ref = x @ weight.T + bias

    # Dispatcher path (tiny -> XLA fast path).
    y_fast = classifier_forward(x, w_fc, b2d, nc)
    jax.block_until_ready(y_fast)
    assert y_fast.shape == (B, C)
    assert jnp.allclose(y_fast, y_ref, atol=1e-5, rtol=1e-5)

    # Forced Pallas path at the same small shapes (collapsed-K kernel, 1x1 grid).
    y_pallas = classifier_forward(x, w_fc, b2d, nc, force_pallas=True)
    jax.block_until_ready(y_pallas)
    assert y_pallas.shape == (B, C)
    assert jnp.allclose(y_pallas, y_ref, atol=1e-4, rtol=1e-4)

    # --- Medium, non-aligned shapes: 128-only padding, tight Bp, collapsed K.
    B2, F2, C2 = 300, 600, 700
    x2 = jax.random.normal(kx2, (B2, F2), dtype=jnp.float32)
    bound2 = 1.0 / (F2 ** 0.5)
    w2 = jax.random.uniform(kw2, (C2, F2), minval=-bound2, maxval=bound2,
                            dtype=jnp.float32)
    b2 = jax.random.uniform(kb2, (C2,), minval=-bound2, maxval=bound2,
                            dtype=jnp.float32)
    y2_ref = x2 @ w2.T + b2

    w2_fc, b2_2d, nc2 = prepare_classifier_params(w2, b2)
    y2 = classifier_forward(x2, w2_fc, b2_2d, nc2)  # exceeds threshold -> Pallas
    jax.block_until_ready(y2)
    assert y2.shape == (B2, C2)
    assert jnp.allclose(y2, y2_ref, atol=2e-3, rtol=2e-3)

    # --- Force the K-looped accumulator kernel via a tiny per-tile VMEM budget.
    y3 = classifier_forward(x2, w2_fc, b2_2d, nc2,
                            tile_vmem_budget=2 * 1024 * 1024)
    jax.block_until_ready(y3)
    assert jnp.allclose(y3, y2_ref, atol=2e-3, rtol=2e-3)

    # --- bf16 weight storage (f32 accumulation) path; looser tolerance.
    w2_fc16, b2_2d16, _ = prepare_classifier_params(w2, b2,
                                                    param_dtype=jnp.bfloat16)
    y4 = classifier_forward(x2, w2_fc16, b2_2d16, nc2)
    jax.block_until_ready(y4)
    assert y4.shape == (B2, C2)
    assert y4.dtype == x2.dtype
    assert jnp.allclose(y4, y2_ref, atol=5e-2, rtol=5e-2)

    print("KERNEL_OK")
</pallas_src>

<mosaic_0001>
module attributes {stable_mosaic.version = 11 : i64} {
  func.func @_linear_bias_kernel(%arg0: i32, %arg1: i32, %arg2: memref<8x128xf32, #tpu.memory_space<vmem>>, %arg3: memref<128x128xf32, #tpu.memory_space<vmem>>, %arg4: memref<1x128xf32, #tpu.memory_space<vmem>>, %arg5: memref<8x128xf32, #tpu.memory_space<vmem>>) attributes {dimension_semantics = [#tpu.dimension_semantics<parallel>, #tpu.dimension_semantics<parallel>], iteration_bounds = array<i64: 1, 1>, scalar_prefetch = 0 : i64, scratch_operands = 0 : i64, tpu.core_type = #tpu.core_type<tc>, window_params = [{transform_indices = @transform_0, window_bounds = array<i64: 8, 128>}, {transform_indices = @transform_1, window_bounds = array<i64: 128, 128>}, {transform_indices = @transform_2, window_bounds = array<i64: 1, 128>}, {transform_indices = @transform_3, window_bounds = array<i64: 8, 128>}]} {
    %c0 = arith.constant 0 : index
    %c0_0 = arith.constant 0 : index
    %0 = vector.load %arg2[%c0, %c0_0] : memref<8x128xf32, #tpu.memory_space<vmem>>, vector<8x128xf32>
    %c0_1 = arith.constant 0 : index
    %c0_2 = arith.constant 0 : index
    %1 = vector.load %arg3[%c0_1, %c0_2] : memref<128x128xf32, #tpu.memory_space<vmem>>, vector<128x128xf32>
    %cst = arith.constant dense<0.000000e+00> : vector<8x128xf32>
    %2 = tpu.matmul %0, %1, %cst {dimension_numbers = #tpu.dot_dimension_numbers<[1], [0], [0], [1], [0, 0, 1, 1], [], []>} : vector<8x128xf32>, vector<128x128xf32>, vector<8x128xf32> -> vector<8x128xf32>
    %c0_3 = arith.constant 0 : index
    %c0_4 = arith.constant 0 : index
    %3 = vector.load %arg4[%c0_3, %c0_4] : memref<1x128xf32, #tpu.memory_space<vmem>>, vector<1x128xf32>
    %4 = vector.broadcast %3 : vector<1x128xf32> to vector<8x128xf32>
    %5 = arith.addf %2, %4 : vector<8x128xf32>
    %c0_5 = arith.constant 0 : index
    %c0_6 = arith.constant 0 : index
    %6 = vector.load %arg5[%c0_5, %c0_6] : memref<8x128xf32, #tpu.memory_space<vmem>>, vector<8x128xf32>
    tpu.vector_store %arg5[%c0_5, %c0_6], %5 {strides = array<i32>} : memref<8x128xf32, #tpu.memory_space<vmem>>, vector<8x128xf32>,
    return
  }
  func.func @transform_0(%arg0: i32, %arg1: i32) -> (i32, i32) {
    %c0_i32 = arith.constant 0 : i32
    %c0_i32_0 = arith.constant 0 : i32
    return %arg0, %c0_i32 : i32, i32
  }
  func.func @transform_1(%arg0: i32, %arg1: i32) -> (i32, i32) {
    %c0_i32 = arith.constant 0 : i32
    %c0_i32_0 = arith.constant 0 : i32
    return %c0_i32, %arg1 : i32, i32
  }
  func.func @transform_2(%arg0: i32, %arg1: i32) -> (i32, i32) {
    %c0_i32 = arith.constant 0 : i32
    %c0_i32_0 = arith.constant 0 : i32
    return %c0_i32, %arg1 : i32, i32
  }
  func.func @transform_3(%arg0: i32, %arg1: i32) -> (i32, i32) {
    %c0_i32 = arith.constant 0 : i32
    return %arg0, %arg1 : i32, i32
  }
}

</mosaic_0001>

<llo_original>
// kernel: tpu_custom_call.1
$region0: #{tpu_custom_call.1}
  #allocation0 [shape = 'u32[]', space=smem, size = 0x4, offset = 0x4, fixed_abs, tag = 'smem constant byte address 0x4 - core index']
  #allocation1 [shape = 'u32[144,128]{1,0:T(1,128)}', space=vmem, size = 0x12000, scoped, tag = 'internal scratch']
  %s0 = inlined_call_operand.hbm [shape: f32[8,128], index: 0, kind: input, shape index: {}]
  %s1 = inlined_call_operand.hbm [shape: f32[128,128], index: 1, kind: input, shape index: {}]
  %s2 = inlined_call_operand.vmem [shape: f32[1,128], index: 2, kind: input, shape index: {}]
  %s3 = inlined_call_operand.hbm [shape: f32[8,128], index: 3, kind: output, shape index: {}]
  %s4 = sld [smem:[#allocation0]]
  $region30: #{tpu_custom_call.1} parent=0
    _
  %s6 = ssub.s32 1, %s4
  %s7 = scalar_select 0, %s6, %s4
  $region1: #{tpu_custom_call.1} parent=0
    #allocation2 [shape = 'u8[4096]{0}', space=vmem, size = 0x1000, scoped, tag = 'input window, operand 0, single buffered']
    #allocation3 [shape = 's32[1]{0}', space=sflag, size = 0x4, scoped, tag = 'scoped memory for tpu_custom_call.1']
    #allocation4 [shape = 's32[1]{0}', space=sflag, size = 0x4, scoped, tag = 'scoped memory for tpu_custom_call.1']
    #allocation5 [shape = 'u8[65536]{0}', space=vmem, size = 0x10000, scoped, tag = 'input window, operand 1, single buffered']
    #allocation6 [shape = 's32[1]{0}', space=sflag, size = 0x4, scoped, tag = 'scoped memory for tpu_custom_call.1']
    #allocation7 [shape = 'u8[4096]{0}', space=vmem, size = 0x1000, scoped, tag = 'output window, operand 0, single buffered']
    %8 = vsyncpa [#allocation3], 0
    %9 = vsyncpa [#allocation6], 0
    %10 = vsyncpa [#allocation4], 0
    // Predicated region
    $region2: #{tpu_custom_call.1} parent=1 // pred_check
      _
    $region3: #{tpu_custom_call.1} parent=1 // pred_check_branch
      %12 = sbr.rel (0) target = $region5
    $region4: #{tpu_custom_call.1} parent=1 // pred_region
      %s14 = ssub.s32 128, 128
      %15 = vsyncadd [#allocation3], %s14
      %s17 = sshll.u32 [#allocation2], 4
      %s18 = int_to_ptr.vmem [resolvable:$true] %s17
      %20 = dma.hbm_to_vmem [thread:$0]  %s0, 128, %s18, [#allocation3]
    $region5: #{tpu_custom_call.1} parent=1 // pred_fallthru
      _
    // Predicated region
    $region6: #{tpu_custom_call.1} parent=1 // pred_check
      _
    $region7: #{tpu_custom_call.1} parent=1 // pred_check_branch
      %22 = sbr.rel (0) target = $region9
    $region8: #{tpu_custom_call.1} parent=1 // pred_region
      %s24 = ssub.s32 2048, 2048
      %25 = vsyncadd [#allocation6], %s24
      %s26 = sshll.u32 [#allocation5], 4
      %s27 = int_to_ptr.vmem [resolvable:$true] %s26
      %32 = dma.hbm_to_vmem [thread:$0]  %s1, 2048, %s27, [#allocation6], 128, 128, 8
    $region9: #{tpu_custom_call.1} parent=1 // pred_fallthru
      _
    // Predicated region
    $region10: #{tpu_custom_call.1} parent=1 // pred_check
      _
    $region11: #{tpu_custom_call.1} parent=1 // pred_check_branch
      %34 = sbr.rel (0) target = $region13
    $region12: #{tpu_custom_call.1} parent=1 // pred_region
      _
    $region13: #{tpu_custom_call.1} parent=1 // pred_fallthru
      _
    // Predicated region
    $region14: #{tpu_custom_call.1} parent=1 // pred_check
      _
    $region15: #{tpu_custom_call.1} parent=1 // pred_check_branch
      %36 = sbr.rel (0) target = $region17
    $region16: #{tpu_custom_call.1} parent=1 // pred_region
      %37 = dma.done [#allocation3], 128
    $region17: #{tpu_custom_call.1} parent=1 // pred_fallthru
      _
    // Predicated region
    $region18: #{tpu_custom_call.1} parent=1 // pred_check
      _
    $region19: #{tpu_custom_call.1} parent=1 // pred_check_branch
      %39 = sbr.rel (0) target = $region21
    $region20: #{tpu_custom_call.1} parent=1 // pred_region
      %40 = dma.done [#allocation6], 2048
    $region21: #{tpu_custom_call.1} parent=1 // pred_fallthru
      _
    %v41 = vld [vmem:[#allocation2] sm:$0xff]
    %v42 = vld [vmem:[#allocation5] sm:$0xff]
    %v43 = vld [vmem:[#allocation5 + $0x8] sm:$0xff]
    %v44 = vld [vmem:[#allocation5 + $0x10] sm:$0xff]
    %v45 = vld [vmem:[#allocation5 + $0x18] sm:$0xff]
    %v46 = vld [vmem:[#allocation5 + $0x20] sm:$0xff]
    %v47 = vld [vmem:[#allocation5 + $0x28] sm:$0xff]
    %v48 = vld [vmem:[#allocation5 + $0x30] sm:$0xff]
    %v49 = vld [vmem:[#allocation5 + $0x38] sm:$0xff]
    %v50 = vld [vmem:[#allocation5 + $0x40] sm:$0xff]
    %v51 = vld [vmem:[#allocation5 + $0x48] sm:$0xff]
    %v52 = vld [vmem:[#allocation5 + $0x50] sm:$0xff]
    %v53 = vld [vmem:[#allocation5 + $0x58] sm:$0xff]
    %v54 = vld [vmem:[#allocation5 + $0x60] sm:$0xff]
    %v55 = vld [vmem:[#allocation5 + $0x68] sm:$0xff]
    %v56 = vld [vmem:[#allocation5 + $0x70] sm:$0xff]
    %v57 = vld [vmem:[#allocation5 + $0x78] sm:$0xff]
    %v58 = vld [vmem:[%s2] sm:$0x1]
    %v60 = vlaneseq
    %v61 = vshrl.u32 %v60, 7
    %v62 = vsub.s32 0, %v61
    %v63 = vrot.slane %v58, %v62
    %65 = vmatprep.subr.mxu0 0.0
    %66 = vmatpush1.msra.mxu0 %v57
    %67 = vmatprep.subr.mxu0 0.0
    %68 = vmatpush1.msra.mxu0 %v56
    %69 = vmatprep.subr.mxu0 0.0
    %70 = vmatpush1.msra.mxu0 %v55
    %71 = vmatprep.subr.mxu0 0.0
    %72 = vmatpush1.msra.mxu0 %v54
    %73 = vmatprep.subr.mxu0 0.0
    %74 = vmatpush1.msra.mxu0 %v53
    %75 = vmatprep.subr.mxu0 0.0
    %76 = vmatpush1.msra.mxu0 %v52
    %77 = vmatprep.subr.mxu0 0.0
    %78 = vmatpush1.msra.mxu0 %v51
    %79 = vmatprep.subr.mxu0 0.0
    %80 = vmatpush1.msra.mxu0 %v50
    %81 = vmatprep.subr.mxu0 0.0
    %82 = vmatpush1.msra.mxu0 %v49
    %83 = vmatprep.subr.mxu0 0.0
    %84 = vmatpush1.msra.mxu0 %v48
    %85 = vmatprep.subr.mxu0 0.0
    %86 = vmatpush1.msra.mxu0 %v47
    %87 = vmatprep.subr.mxu0 0.0
    %88 = vmatpush1.msra.mxu0 %v46
    %89 = vmatprep.subr.mxu0 0.0
    %90 = vmatpush1.msra.mxu0 %v45
    %91 = vmatprep.subr.mxu0 0.0
    %92 = vmatpush1.msra.mxu0 %v44
    %93 = vmatprep.subr.mxu0 0.0
    %94 = vmatpush1.msra.mxu0 %v43
    %95 = vmatprep.subr.mxu0 0.0
    %96 = vmatpush1.msra.mxu0 %v42
    %97 = vmatprep.subr.mxu0 0.0
    %98 = vmatpush2.msra.mxu0 0.0
    %99 = vmatprep.subr.mxu0 0.0
    %100 = vmatpush2.msra.mxu0 0.0
    %101 = vmatprep.subr.mxu0 0.0
    %102 = vmatpush2.msra.mxu0 0.0
    %103 = vmatprep.subr.mxu0 0.0
    %104 = vmatpush2.msra.mxu0 0.0
    %105 = vmatprep.subr.mxu0 0.0
    %106 = vmatpush2.msra.mxu0 0.0
    %107 = vmatprep.subr.mxu0 0.0
    %108 = vmatpush2.msra.mxu0 0.0
    %109 = vmatprep.subr.mxu0 0.0
    %110 = vmatpush2.msra.mxu0 0.0
    %111 = vmatprep.subr.mxu0 0.0
    %112 = vmatpush2.msra.mxu0 0.0
    %113 = vmatprep.subr.mxu0 0.0
    %114 = vmatpush2.msra.mxu0 0.0
    %115 = vmatprep.subr.mxu0 0.0
    %116 = vmatpush2.msra.mxu0 0.0
    %117 = vmatprep.subr.mxu0 0.0
    %118 = vmatpush2.msra.mxu0 0.0
    %119 = vmatprep.subr.mxu0 0.0
    %120 = vmatpush2.msra.mxu0 0.0
    %121 = vmatprep.subr.mxu0 0.0
    %122 = vmatpush2.msra.mxu0 0.0
    %123 = vmatprep.subr.mxu0 0.0
    %124 = vmatpush2.msra.mxu0 0.0
    %125 = vmatprep.subr.mxu0 0.0
    %126 = vmatpush2.msra.mxu0 0.0
    %127 = vmatprep.subr.mxu0 0.0
    %128 = vmatpush2.msra.mxu0 0.0
    %129 = vmatprep.mubr.f32.mxu0 0.0
    %130 = vmatmul.mubr.f32.gmra.mxu0 %v41
    %v131 = vpop.f32.mrf.mxu0
    %v132 = vadd.f32 %v63, %v131
    %v133 = vpop.f32.mrf.mxu0
    %134 = vdwg.mxu0
    %135 = vst [vmem:[#allocation7] sm:$0xff] %v132
    // Predicated region
    $region22: #{tpu_custom_call.1} parent=1 // pred_check
      _
    $region23: #{tpu_custom_call.1} parent=1 // pred_check_branch
      %137 = sbr.rel (0) target = $region25
    $region24: #{tpu_custom_call.1} parent=1 // pred_region
      %s139 = ssub.s32 128, 128
      %140 = vsyncadd [#allocation4], %s139
      %s142 = sshll.u32 [#allocation7], 4
      %s143 = int_to_ptr.vmem [resolvable:$true] %s142
      %145 = dma.vmem_to_hbm [thread:$0]  %s143, 128, %s3, [#allocation4]
    $region25: #{tpu_custom_call.1} parent=1 // pred_fallthru
      _
    // Predicated region
    $region26: #{tpu_custom_call.1} parent=1 // pred_check
      _
    $region27: #{tpu_custom_call.1} parent=1 // pred_check_branch
      %147 = sbr.rel (0) target = $region29
    $region28: #{tpu_custom_call.1} parent=1 // pred_region
      %148 = dma.done [#allocation4], 128
    $region29: #{tpu_custom_call.1} parent=1 // pred_fallthru
      _
    %149 = vsyncpa [#allocation3], 1
    %150 = vsyncpa [#allocation6], 1
    %151 = vsyncpa [#allocation4], 1

</llo_original>
